<compile_context>
chip_gen: v6e
topology: v6e:2x2x1
jax: 0.10.0
libtpu: 0.0.40
codegen_flags: <defaults>
</compile_context>

<pallas_src>
import jax
import jax.numpy as jnp
from jax.experimental import pallas as pl
from jax.experimental.pallas import tpu as pltpu

# ---- model dimensions (small, consistent with the forward contract) ----------
T = 16          # input audio frames (synthetic "mel spectrogram" time dim)
F = 32          # input feature / mel-bin dim
N_TOK = 25      # audio_encoder output token count (asserted == 25 in forward)
N_TOK_PAD = 32  # sublane-aligned padding of the 25 tokens
D_ENC = 64      # audio encoder hidden dim
D_LLM = 128     # audio_proj output (LLM embedding) dim


def _audio_tokenizer_kernel(x_ref, wt_ref, wf_ref, bf_ref, wp_ref, bp_ref, out_ref):
    """Fused encoder + projection for one clip (one grid step).

    x_ref  : (T, F)            f32   input audio features of this clip
    wt_ref : (N_TOK_PAD, T)    bf16  learned time-pooling tokens (zero-padded 25 -> 32)
    wf_ref : (F, D_ENC)        bf16  encoder feature projection
    bf_ref : (1, D_ENC)        f32   encoder bias
    wp_ref : (D_ENC, D_LLM)    bf16  audio_proj weight
    bp_ref : (1, D_LLM)        f32   audio_proj bias
    out_ref: (N_TOK_PAD, D_LLM) f32
    """
    x = x_ref[...].astype(jnp.bfloat16)                                       # (T, F)

    # Reassociated encoder:  wt @ (x @ wf)  ==  (wt @ x) @ wf
    xw = jnp.dot(x, wf_ref[...], preferred_element_type=jnp.float32)          # (T, D_ENC)
    h = jnp.dot(wt_ref[...], xw.astype(jnp.bfloat16),
                preferred_element_type=jnp.float32)                           # (32, D_ENC)
    h = jax.nn.gelu(h + bf_ref[...])                                          # f32 VPU/EUP

    # audio_proj: Linear(D_ENC -> D_LLM)
    y = jnp.dot(h.astype(jnp.bfloat16), wp_ref[...],
                preferred_element_type=jnp.float32)                           # (32, D_LLM)
    out_ref[...] = (y + bp_ref[...]).astype(out_ref.dtype)


@jax.jit
def audio_tokenizer_forward_batched(audio_feats, params):
    """audio_feats: (B, T, F) float32 -- batched outputs of load_audio_trans (synthetic).

    Returns (B, N_TOK, D_LLM), each clip equal to audio_proj(audio_encoder(clip)).
    """
    wt, wf, bf, wp, bp = params
    B = audio_feats.shape[0]

    # MXU-dtype + sublane-alignment hygiene (done once, outside the kernel).
    wt_pad = jnp.zeros((N_TOK_PAD, T), jnp.bfloat16).at[:N_TOK].set(wt.astype(jnp.bfloat16))
    wf_bf = wf.astype(jnp.bfloat16)
    wp_bf = wp.astype(jnp.bfloat16)

    shared2d = lambda shape: pl.BlockSpec(shape, lambda b: (0, 0))  # weight resident across grid

    flops_per_clip = 2 * (T * F * D_ENC
                          + N_TOK_PAD * T * D_ENC
                          + N_TOK_PAD * D_ENC * D_LLM)
    bytes_accessed = (B * T * F * 4                 # x
                      + N_TOK_PAD * T * 2           # wt (bf16)
                      + F * D_ENC * 2               # wf (bf16)
                      + D_ENC * 4                   # bf
                      + D_ENC * D_LLM * 2           # wp (bf16)
                      + D_LLM * 4                   # bp
                      + B * N_TOK_PAD * D_LLM * 4)  # out

    out = pl.pallas_call(
        _audio_tokenizer_kernel,
        grid=(B,),
        in_specs=[
            pl.BlockSpec((None, T, F), lambda b: (b, 0, 0)),   # per-clip block
            shared2d((N_TOK_PAD, T)),
            shared2d((F, D_ENC)),
            shared2d((1, D_ENC)),
            shared2d((D_ENC, D_LLM)),
            shared2d((1, D_LLM)),
        ],
        out_specs=pl.BlockSpec((None, N_TOK_PAD, D_LLM), lambda b: (b, 0, 0)),
        out_shape=jax.ShapeDtypeStruct((B, N_TOK_PAD, D_LLM), jnp.float32),
        compiler_params=pltpu.CompilerParams(
            dimension_semantics=("parallel",)),                # shard clips across v7x TCs
        cost_estimate=pl.CostEstimate(
            flops=B * flops_per_clip,
            transcendentals=B * N_TOK_PAD * D_ENC,
            bytes_accessed=bytes_accessed),
    )(audio_feats, wt_pad, wf_bf, bf, wp_bf, bp)

    # Drop the sublane padding rows -> restores the shape[1] == 25 contract.
    return out[:, :N_TOK, :]


def audio_tokenizer_forward(audio_feats, params):
    """Single-clip path matching the original module: (T, F) -> (1, 25, D_LLM)."""
    out = audio_tokenizer_forward_batched(audio_feats[None], params)  # unsqueeze(0)
    assert out.shape[1] == N_TOK  # assert audio_input.shape[1] == 25
    return out


def init_params(key):
    k1, k2, k3, k4, k5 = jax.random.split(key, 5)
    wt = jax.random.normal(k1, (N_TOK, T), jnp.float32) * 0.1
    wf = jax.random.normal(k2, (F, D_ENC), jnp.float32) * (1.0 / jnp.sqrt(F))
    bf = jax.random.normal(k3, (1, D_ENC), jnp.float32) * 0.01
    wp = jax.random.normal(k4, (D_ENC, D_LLM), jnp.float32) * (1.0 / jnp.sqrt(D_ENC))
    bp = jax.random.normal(k5, (1, D_LLM), jnp.float32) * 0.01
    return wt, wf, bf, wp, bp


def reference_forward_batched(audio_feats, params):
    """Pure-JAX f32 reference with the original association: (wt @ x) @ wf."""
    wt, wf, bf, wp, bp = params
    pooled = jnp.einsum('nt,btf->bnf', wt, audio_feats)
    h = jax.nn.gelu(pooled @ wf + bf)
    return h @ wp + bp


if __name__ == "__main__":
    key = jax.random.PRNGKey(0)
    k_in, k_par = jax.random.split(key)

    # TODO(synk): load_audio_trans (torchaudio file IO + whisper-style mel transform)
    # has no Pallas equivalent; synthesize its output deterministically instead.
    B = 4  # multiple clips batched per pallas_call to amortize dispatch
    audio_feats = jax.random.normal(k_in, (B, T, F), jnp.float32)

    params = init_params(k_par)

    # Batched path (one kernel call for all clips).
    out = audio_tokenizer_forward_batched(audio_feats, params)
    out = jax.block_until_ready(out)
    assert out.shape == (B, N_TOK, D_LLM), out.shape

    # f32 reference; bf16 MXU operands in the kernel -> loosened tolerance.
    ref = reference_forward_batched(audio_feats, params)
    assert jnp.allclose(out, ref, atol=2e-2, rtol=2e-2)

    # Single-clip path matching the original module contract (unsqueeze(0), shape[1]==25).
    out1 = jax.block_until_ready(audio_tokenizer_forward(audio_feats[0], params))
    assert out1.shape == (1, N_TOK, D_LLM), out1.shape
    assert jnp.allclose(out1[0], ref[0], atol=2e-2, rtol=2e-2)

    print("KERNEL_OK")
</pallas_src>

<mosaic_0001>
module attributes {stable_mosaic.version = 11 : i64} {
  func.func @_audio_tokenizer_kernel(%arg0: i32, %arg1: memref<1x16x32xf32, #tpu.memory_space<vmem>>, %arg2: memref<32x16xbf16, #tpu.memory_space<vmem>>, %arg3: memref<32x64xbf16, #tpu.memory_space<vmem>>, %arg4: memref<1x64xf32, #tpu.memory_space<vmem>>, %arg5: memref<64x128xbf16, #tpu.memory_space<vmem>>, %arg6: memref<1x128xf32, #tpu.memory_space<vmem>>, %arg7: memref<1x32x128xf32, #tpu.memory_space<vmem>>) attributes {dimension_semantics = [#tpu.dimension_semantics<parallel>], iteration_bounds = array<i64: 4>, scalar_prefetch = 0 : i64, scratch_operands = 0 : i64, tpu.core_type = #tpu.core_type<tc>, window_params = [{transform_indices = @transform_0, window_bounds = array<i64: 1, 16, 32>}, {pipeline_mode = #tpu.pipeline_mode<synchronous>, transform_indices = @transform_1, window_bounds = array<i64: 32, 16>}, {pipeline_mode = #tpu.pipeline_mode<synchronous>, transform_indices = @transform_2, window_bounds = array<i64: 32, 64>}, {pipeline_mode = #tpu.pipeline_mode<synchronous>, transform_indices = @transform_3, window_bounds = array<i64: 1, 64>}, {pipeline_mode = #tpu.pipeline_mode<synchronous>, transform_indices = @transform_4, window_bounds = array<i64: 64, 128>}, {pipeline_mode = #tpu.pipeline_mode<synchronous>, transform_indices = @transform_5, window_bounds = array<i64: 1, 128>}, {transform_indices = @transform_6, window_bounds = array<i64: 1, 32, 128>}]} {
    %c0 = arith.constant 0 : index
    %c0_0 = arith.constant 0 : index
    %c0_1 = arith.constant 0 : index
    %0 = vector.load %arg1[%c0, %c0_0, %c0_1] : memref<1x16x32xf32, #tpu.memory_space<vmem>>, vector<1x16x32xf32>
    %1 = vector.shape_cast %0 : vector<1x16x32xf32> to vector<16x32xf32>
    %2 = arith.truncf %1 : vector<16x32xf32> to vector<16x32xbf16>
    %c0_2 = arith.constant 0 : index
    %c0_3 = arith.constant 0 : index
    %3 = vector.load %arg3[%c0_2, %c0_3] : memref<32x64xbf16, #tpu.memory_space<vmem>>, vector<32x64xbf16>
    %cst = arith.constant dense<0.000000e+00> : vector<16x64xf32>
    %4 = tpu.matmul %2, %3, %cst {dimension_numbers = #tpu.dot_dimension_numbers<[1], [0], [0], [1], [0, 0, 1, 1], [], []>} : vector<16x32xbf16>, vector<32x64xbf16>, vector<16x64xf32> -> vector<16x64xf32>
    %c0_4 = arith.constant 0 : index
    %c0_5 = arith.constant 0 : index
    %5 = vector.load %arg2[%c0_4, %c0_5] : memref<32x16xbf16, #tpu.memory_space<vmem>>, vector<32x16xbf16>
    %6 = arith.truncf %4 : vector<16x64xf32> to vector<16x64xbf16>
    %cst_6 = arith.constant dense<0.000000e+00> : vector<32x64xf32>
    %7 = tpu.matmul %5, %6, %cst_6 {dimension_numbers = #tpu.dot_dimension_numbers<[1], [0], [0], [1], [0, 0, 1, 1], [], []>} : vector<32x16xbf16>, vector<16x64xbf16>, vector<32x64xf32> -> vector<32x64xf32>
    %c0_7 = arith.constant 0 : index
    %c0_8 = arith.constant 0 : index
    %8 = vector.load %arg4[%c0_7, %c0_8] : memref<1x64xf32, #tpu.memory_space<vmem>>, vector<1x64xf32>
    %9 = vector.broadcast %8 : vector<1x64xf32> to vector<32x64xf32>
    %10 = arith.addf %7, %9 : vector<32x64xf32>
    %11 = arith.mulf %10, %10 : vector<32x64xf32>
    %12 = arith.mulf %10, %11 : vector<32x64xf32>
    %cst_9 = arith.constant 4.471500e-02 : f32
    %13 = vector.broadcast %cst_9 : f32 to vector<32x64xf32>
    %14 = arith.mulf %13, %12 : vector<32x64xf32>
    %15 = arith.addf %10, %14 : vector<32x64xf32>
    %cst_10 = arith.constant 0.797884583 : f32
    %16 = vector.broadcast %cst_10 : f32 to vector<32x64xf32>
    %17 = arith.mulf %16, %15 : vector<32x64xf32>
    %18 = math.tanh %17 : vector<32x64xf32>
    %cst_11 = arith.constant 1.000000e+00 : f32
    %19 = vector.broadcast %cst_11 : f32 to vector<32x64xf32>
    %20 = arith.addf %19, %18 : vector<32x64xf32>
    %cst_12 = arith.constant 5.000000e-01 : f32
    %21 = vector.broadcast %cst_12 : f32 to vector<32x64xf32>
    %22 = arith.mulf %21, %20 : vector<32x64xf32>
    %23 = arith.mulf %10, %22 : vector<32x64xf32>
    %24 = arith.truncf %23 : vector<32x64xf32> to vector<32x64xbf16>
    %c0_13 = arith.constant 0 : index
    %c0_14 = arith.constant 0 : index
    %25 = vector.load %arg5[%c0_13, %c0_14] : memref<64x128xbf16, #tpu.memory_space<vmem>>, vector<64x128xbf16>
    %cst_15 = arith.constant dense<0.000000e+00> : vector<32x128xf32>
    %26 = tpu.matmul %24, %25, %cst_15 {dimension_numbers = #tpu.dot_dimension_numbers<[1], [0], [0], [1], [0, 0, 1, 1], [], []>} : vector<32x64xbf16>, vector<64x128xbf16>, vector<32x128xf32> -> vector<32x128xf32>
    %c0_16 = arith.constant 0 : index
    %c0_17 = arith.constant 0 : index
    %27 = vector.load %arg6[%c0_16, %c0_17] : memref<1x128xf32, #tpu.memory_space<vmem>>, vector<1x128xf32>
    %28 = vector.broadcast %27 : vector<1x128xf32> to vector<32x128xf32>
    %29 = arith.addf %26, %28 : vector<32x128xf32>
    %c0_18 = arith.constant 0 : index
    %c0_19 = arith.constant 0 : index
    %c0_20 = arith.constant 0 : index
    %30 = vector.load %arg7[%c0_18, %c0_19, %c0_20] : memref<1x32x128xf32, #tpu.memory_space<vmem>>, vector<1x32x128xf32>
    %31 = vector.shape_cast %30 : vector<1x32x128xf32> to vector<32x128xf32>
    %32 = vector.shape_cast %29 : vector<32x128xf32> to vector<1x32x128xf32>
    tpu.vector_store %arg7[%c0_18, %c0_19, %c0_20], %32 {strides = array<i32>} : memref<1x32x128xf32, #tpu.memory_space<vmem>>, vector<1x32x128xf32>,
    return
  }
  func.func @transform_0(%arg0: i32) -> (i32, i32, i32) {
    %c0_i32 = arith.constant 0 : i32
    %c0_i32_0 = arith.constant 0 : i32
    %c0_i32_1 = arith.constant 0 : i32
    return %arg0, %c0_i32, %c0_i32_0 : i32, i32, i32
  }
  func.func @transform_1(%arg0: i32) -> (i32, i32) {
    %c0_i32 = arith.constant 0 : i32
    %c0_i32_0 = arith.constant 0 : i32
    %c0_i32_1 = arith.constant 0 : i32
    return %c0_i32, %c0_i32_0 : i32, i32
  }
  func.func @transform_2(%arg0: i32) -> (i32, i32) {
    %c0_i32 = arith.constant 0 : i32
    %c0_i32_0 = arith.constant 0 : i32
    %c0_i32_1 = arith.constant 0 : i32
    return %c0_i32, %c0_i32_0 : i32, i32
  }
  func.func @transform_3(%arg0: i32) -> (i32, i32) {
    %c0_i32 = arith.constant 0 : i32
    %c0_i32_0 = arith.constant 0 : i32
    %c0_i32_1 = arith.constant 0 : i32
    return %c0_i32, %c0_i32_0 : i32, i32
  }
  func.func @transform_4(%arg0: i32) -> (i32, i32) {
    %c0_i32 = arith.constant 0 : i32
    %c0_i32_0 = arith.constant 0 : i32
    %c0_i32_1 = arith.constant 0 : i32
    return %c0_i32, %c0_i32_0 : i32, i32
  }
  func.func @transform_5(%arg0: i32) -> (i32, i32) {
    %c0_i32 = arith.constant 0 : i32
    %c0_i32_0 = arith.constant 0 : i32
    %c0_i32_1 = arith.constant 0 : i32
    return %c0_i32, %c0_i32_0 : i32, i32
  }
  func.func @transform_6(%arg0: i32) -> (i32, i32, i32) {
    %c0_i32 = arith.constant 0 : i32
    %c0_i32_0 = arith.constant 0 : i32
    %c0_i32_1 = arith.constant 0 : i32
    return %arg0, %c0_i32, %c0_i32_0 : i32, i32, i32
  }
}

</mosaic_0001>

<llo_original>
// kernel: audio_tokenizer_forward_batched.1
$region0: #{audio_tokenizer_forward_batched.1}
  #allocation0 [shape = 'u32[]', space=smem, size = 0x4, offset = 0x4, fixed_abs, tag = 'smem constant byte address 0x4 - core index']
  #allocation1 [shape = 'u32[144,128]{1,0:T(1,128)}', space=vmem, size = 0x12000, scoped, tag = 'internal scratch']
  %s0 = inlined_call_operand.vmem [shape: f32[4,16,32], index: 0, kind: input, shape index: {}]
  %s1 = inlined_call_operand.vmem [shape: bf16[32,16], index: 1, kind: input, shape index: {}]
  %s2 = inlined_call_operand.vmem [shape: bf16[32,64], index: 2, kind: input, shape index: {}]
  %s3 = inlined_call_operand.vmem [shape: f32[1,64], index: 3, kind: input, shape index: {}]
  %s4 = inlined_call_operand.vmem [shape: bf16[64,128], index: 4, kind: input, shape index: {}]
  %s5 = inlined_call_operand.vmem [shape: f32[1,128], index: 5, kind: input, shape index: {}]
  %s6 = inlined_call_operand.vmem [shape: f32[4,32,128], index: 6, kind: output, shape index: {}]
  %s7 = sld [smem:[#allocation0]]
  $region57: #{audio_tokenizer_forward_batched.1} parent=0
    _
  %s9 = ssub.s32 1, %s7
  %s10 = scalar_select 0, %s9, %s7
  loop: start=0, step=1, limit=6
  $region2: #{audio_tokenizer_forward_batched.1} parent=0 // loop_pre_header
    _
  $region3: #{audio_tokenizer_forward_batched.1} parent=0 // loop_header
    %s12 = sphi 0, %s16
    %p13 = scmp.ge.s32.totalorder %s12, 6
    %s22 = sphi 0, %s24
    %s25 = sphi 0, %s22
    %s26 = sphi 0, %s25
    %s42 = sphi 0, %s26
    %s46 = sphi 0, %s46
    %s48 = sphi 0, %s46
    %s49 = sphi 0, %s48
    %s63 = sphi 0, %s49
    %s67 = sphi 0, %s67
    %s69 = sphi 0, %s67
    %s70 = sphi 0, %s69
    %s84 = sphi 0, %s70
    %s88 = sphi 0, %s88
    %s90 = sphi 0, %s88
    %s91 = sphi 0, %s90
    %s105 = sphi 0, %s91
    %s109 = sphi 0, %s109
    %s111 = sphi 0, %s109
    %s112 = sphi 0, %s111
    %s126 = sphi 0, %s112
    %s130 = sphi 0, %s130
    %s132 = sphi 0, %s130
    %s133 = sphi 0, %s132
    %s147 = sphi 0, %s133
    %s153 = sphi 0, %s155
    %s156 = sphi 0, %s153
    %s157 = sphi 0, %s156
    %s173 = sphi 0, %s157
  $region4: #{audio_tokenizer_forward_batched.1} parent=0 // loop_header_branch
    %15 = sbr.rel (%p13) target = $region8
  $region5: #{audio_tokenizer_forward_batched.1} parent=0 // loop_body
    %s17 = ssub.s32 %s12, 1
    %s18 = ssub.s32 %s12, 2
    %s19 = sadd.s32 %s12, 1
    %s20 = ssub.s32 %s12, %s19
    %p21 = scmp.eq.s32.totalorder %s20, 0
    %s23 = sadd.s32 %s22, 1
    %s24 = scalar_select %p21, %s22, %s23
    %p27 = pneg %p21
    %p28 = scmp.eq.s32.totalorder %s12, 3
    %p29 = por %p27, %p28
    %p30 = scmp.ne.s32.totalorder %s22, %s25
    %p31 = scmp.eq.s32.totalorder %s12, 0
    %p32 = por %p30, %p31
    %p33 = scmp.ne.s32.totalorder %s22, %s25
    %p34 = scmp.eq.s32.totalorder %s17, 3
    %p35 = por %p33, %p34
    %p36 = scmp.ne.s32.totalorder %s25, %s26
    %p37 = scmp.eq.s32.totalorder %s17, 0
    %p38 = por %p36, %p37
    %p39 = scmp.ne.s32.totalorder %s25, %s26
    %p40 = scmp.eq.s32.totalorder %s18, 3
    %p41 = por %p39, %p40
    %p43 = scmp.ne.s32.totalorder %s26, %s42
    %p44 = scmp.eq.s32.totalorder %s18, 0
    %p45 = por %p43, %p44
    %s47 = sadd.s32 %s46, 1
    %p50 = scmp.eq.s32.totalorder %s12, 3
    %p51 = scmp.ne.s32.totalorder %s46, %s48
    %p52 = scmp.eq.s32.totalorder %s12, 0
    %p53 = por %p51, %p52
    %p54 = scmp.ne.s32.totalorder %s46, %s48
    %p55 = scmp.eq.s32.totalorder %s17, 3
    %p56 = por %p54, %p55
    %p57 = scmp.ne.s32.totalorder %s48, %s49
    %p58 = scmp.eq.s32.totalorder %s17, 0
    %p59 = por %p57, %p58
    %p60 = scmp.ne.s32.totalorder %s48, %s49
    %p61 = scmp.eq.s32.totalorder %s18, 3
    %p62 = por %p60, %p61
    %p64 = scmp.ne.s32.totalorder %s49, %s63
    %p65 = scmp.eq.s32.totalorder %s18, 0
    %p66 = por %p64, %p65
    %s68 = sadd.s32 %s67, 1
    %p71 = scmp.eq.s32.totalorder %s12, 3
    %p72 = scmp.ne.s32.totalorder %s67, %s69
    %p73 = scmp.eq.s32.totalorder %s12, 0
    %p74 = por %p72, %p73
    %p75 = scmp.ne.s32.totalorder %s67, %s69
    %p76 = scmp.eq.s32.totalorder %s17, 3
    %p77 = por %p75, %p76
    %p78 = scmp.ne.s32.totalorder %s69, %s70
    %p79 = scmp.eq.s32.totalorder %s17, 0
    %p80 = por %p78, %p79
    %p81 = scmp.ne.s32.totalorder %s69, %s70
    %p82 = scmp.eq.s32.totalorder %s18, 3
    %p83 = por %p81, %p82
    %p85 = scmp.ne.s32.totalorder %s70, %s84
    %p86 = scmp.eq.s32.totalorder %s18, 0
    %p87 = por %p85, %p86
    %s89 = sadd.s32 %s88, 1
    %p92 = scmp.eq.s32.totalorder %s12, 3
    %p93 = scmp.ne.s32.totalorder %s88, %s90
    %p94 = scmp.eq.s32.totalorder %s12, 0
    %p95 = por %p93, %p94
    %p96 = scmp.ne.s32.totalorder %s88, %s90
    %p97 = scmp.eq.s32.totalorder %s17, 3
    %p98 = por %p96, %p97
    %p99 = scmp.ne.s32.totalorder %s90, %s91
    %p100 = scmp.eq.s32.totalorder %s17, 0
    %p101 = por %p99, %p100
    %p102 = scmp.ne.s32.totalorder %s90, %s91
    %p103 = scmp.eq.s32.totalorder %s18, 3
    %p104 = por %p102, %p103
    %p106 = scmp.ne.s32.totalorder %s91, %s105
    %p107 = scmp.eq.s32.totalorder %s18, 0
    %p108 = por %p106, %p107
    %s110 = sadd.s32 %s109, 1
    %p113 = scmp.eq.s32.totalorder %s12, 3
    %p114 = scmp.ne.s32.totalorder %s109, %s111
    %p115 = scmp.eq.s32.totalorder %s12, 0
    %p116 = por %p114, %p115
    %p117 = scmp.ne.s32.totalorder %s109, %s111
    %p118 = scmp.eq.s32.totalorder %s17, 3
    %p119 = por %p117, %p118
    %p120 = scmp.ne.s32.totalorder %s111, %s112
    %p121 = scmp.eq.s32.totalorder %s17, 0
    %p122 = por %p120, %p121
    %p123 = scmp.ne.s32.totalorder %s111, %s112
    %p124 = scmp.eq.s32.totalorder %s18, 3
    %p125 = por %p123, %p124
    %p127 = scmp.ne.s32.totalorder %s112, %s126
    %p128 = scmp.eq.s32.totalorder %s18, 0
    %p129 = por %p127, %p128
    %s131 = sadd.s32 %s130, 1
    %p134 = scmp.eq.s32.totalorder %s12, 3
    %p135 = scmp.ne.s32.totalorder %s130, %s132
    %p136 = scmp.eq.s32.totalorder %s12, 0
    %p137 = por %p135, %p136
    %p138 = scmp.ne.s32.totalorder %s130, %s132
    %p139 = scmp.eq.s32.totalorder %s17, 3
    %p140 = por %p138, %p139
    %p141 = scmp.ne.s32.totalorder %s132, %s133
    %p142 = scmp.eq.s32.totalorder %s17, 0
    %p143 = por %p141, %p142
    %p144 = scmp.ne.s32.totalorder %s132, %s133
    %p145 = scmp.eq.s32.totalorder %s18, 3
    %p146 = por %p144, %p145
    %p148 = scmp.ne.s32.totalorder %s133, %s147
    %p149 = scmp.eq.s32.totalorder %s18, 0
    %p150 = por %p148, %p149
    %s151 = ssub.s32 %s12, %s19
    %p152 = scmp.eq.s32.totalorder %s151, 0
    %s154 = sadd.s32 %s153, 1
    %s155 = scalar_select %p152, %s153, %s154
    %p158 = pneg %p152
    %p159 = scmp.eq.s32.totalorder %s12, 3
    %p160 = por %p158, %p159
    %p161 = scmp.ne.s32.totalorder %s153, %s156
    %p162 = scmp.eq.s32.totalorder %s12, 0
    %p163 = por %p161, %p162
    %p164 = scmp.ne.s32.totalorder %s153, %s156
    %p165 = scmp.eq.s32.totalorder %s17, 3
    %p166 = por %p164, %p165
    %p167 = scmp.ne.s32.totalorder %s156, %s157
    %p168 = scmp.eq.s32.totalorder %s17, 0
    %p169 = por %p167, %p168
    %p170 = scmp.ne.s32.totalorder %s156, %s157
    %p171 = scmp.eq.s32.totalorder %s18, 3
    %p172 = por %p170, %p171
    %p174 = scmp.ne.s32.totalorder %s157, %s173
    %p175 = scmp.eq.s32.totalorder %s18, 0
    %p176 = por %p174, %p175
    %p177 = scmp.le.s32.totalorder 1, %s12
    %p178 = scmp.lt.s32.totalorder %s12, 5
    %p179 = pnand %p177, %p178
    %p180 = pneg %p179
    // Predicated region
    $region9: #{audio_tokenizer_forward_batched.1} parent=5 // pred_check
      _
    $region10: #{audio_tokenizer_forward_batched.1} parent=5 // pred_check_branch
      %182 = sbr.rel (%p179) target = $region12
    $region11: #{audio_tokenizer_forward_batched.1} parent=5 // pred_region
      %s183 = ssub.s32 %s12, 1
      // Predicated region
      $region13: #{audio_tokenizer_forward_batched.1} parent=11 // pred_check
        %p184 = pneg %p59
      $region14: #{audio_tokenizer_forward_batched.1} parent=11 // pred_check_branch
        %186 = sbr.rel (%p184) target = $region16
      $region15: #{audio_tokenizer_forward_batched.1} parent=11 // pred_region
        _
      $region16: #{audio_tokenizer_forward_batched.1} parent=11 // pred_fallthru
        _
      // Predicated region
      $region17: #{audio_tokenizer_forward_batched.1} parent=11 // pred_check
        %p187 = pneg %p80
      $region18: #{audio_tokenizer_forward_batched.1} parent=11 // pred_check_branch
        %189 = sbr.rel (%p187) target = $region20
      $region19: #{audio_tokenizer_forward_batched.1} parent=11 // pred_region
        _
      $region20: #{audio_tokenizer_forward_batched.1} parent=11 // pred_fallthru
        _
      // Predicated region
      $region21: #{audio_tokenizer_forward_batched.1} parent=11 // pred_check
        %p190 = pneg %p101
      $region22: #{audio_tokenizer_forward_batched.1} parent=11 // pred_check_branch
        %192 = sbr.rel (%p190) target = $region24
      $region23: #{audio_tokenizer_forward_batched.1} parent=11 // pred_region
        _
      $region24: #{audio_tokenizer_forward_batched.1} parent=11 // pred_fallthru
        _
      // Predicated region
      $region25: #{audio_tokenizer_forward_batched.1} parent=11 // pred_check
        %p193 = pneg %p122
      $region26: #{audio_tokenizer_forward_batched.1} parent=11 // pred_check_branch
        %195 = sbr.rel (%p193) target = $region28
      $region27: #{audio_tokenizer_forward_batched.1} parent=11 // pred_region
        _
      $region28: #{audio_tokenizer_forward_batched.1} parent=11 // pred_fallthru
        _
      // Predicated region
      $region29: #{audio_tokenizer_forward_batched.1} parent=11 // pred_check
        %p196 = pneg %p143
      $region30: #{audio_tokenizer_forward_batched.1} parent=11 // pred_check_branch
        %198 = sbr.rel (%p196) target = $region32
      $region31: #{audio_tokenizer_forward_batched.1} parent=11 // pred_region
        _
      $region32: #{audio_tokenizer_forward_batched.1} parent=11 // pred_fallthru
        _
    $region12: #{audio_tokenizer_forward_batched.1} parent=5 // pred_fallthru
      _
    %p199 = scmp.lt.s32.totalorder %s12, 4
    // Predicated region
    $region33: #{audio_tokenizer_forward_batched.1} parent=5 // pred_check
      %p200 = pneg %p199
    $region34: #{audio_tokenizer_forward_batched.1} parent=5 // pred_check_branch
      %202 = sbr.rel (%p200) target = $region36
    $region35: #{audio_tokenizer_forward_batched.1} parent=5 // pred_region
      // Predicated region
      $region37: #{audio_tokenizer_forward_batched.1} parent=35 // pred_check
        %p203 = pneg %p32
      $region38: #{audio_tokenizer_forward_batched.1} parent=35 // pred_check_branch
        %205 = sbr.rel (%p203) target = $region40
      $region39: #{audio_tokenizer_forward_batched.1} parent=35 // pred_region
        %p206 = scmp.lt.s32.totalorder %s12, 3
        %s207 = scalar_select %p206, %s12, 3
        %s208 = smul.addr %s207, 2
        %s209 = smul.addr %s208, 8
        %s210 = scalar_lea.vmem %s0, %s209
      $region40: #{audio_tokenizer_forward_batched.1} parent=35 // pred_fallthru
        _
    $region36: #{audio_tokenizer_forward_batched.1} parent=5 // pred_fallthru
      _
    %p211 = scmp.le.s32.totalorder 1, %s12
    %p212 = scmp.lt.s32.totalorder %s12, 5
    %p213 = pnand %p211, %p212
    %p214 = pneg %p213
    // Predicated region
    $region41: #{audio_tokenizer_forward_batched.1} parent=5 // pred_check
      _
    $region42: #{audio_tokenizer_forward_batched.1} parent=5 // pred_check_branch
      %216 = sbr.rel (%p213) target = $region44
    $region43: #{audio_tokenizer_forward_batched.1} parent=5 // pred_region
      %s217 = ssub.s32 %s12, 1
      %p218 = scmp.lt.s32.totalorder %s17, 3
      %s219 = scalar_select %p218, %s17, 3
      %s220 = smul.addr %s219, 2
      %s221 = smul.addr %s220, 8
      %s222 = scalar_lea.vmem %s0, %s221
      %p223 = pneg %p38
      %p224 = pneg %p35
      %p225 = pneg %p59
      %p226 = pneg %p56
      %p227 = pneg %p80
      %p228 = pneg %p77
      %p229 = pneg %p101
      %p230 = pneg %p98
      %p231 = pneg %p122
      %p232 = pneg %p119
      %p233 = pneg %p143
      %p234 = pneg %p140
      %p235 = pneg %p169
      %p236 = pneg %p166
      %p237 = scmp.lt.s32.totalorder %s17, 3
      %s238 = scalar_select %p237, %s17, 3
      %s239 = smul.addr %s238, 4
      %s240 = smul.addr %s239, 8
      %s241 = scalar_lea.vmem %s6, %s240
      %p242 = scmp.lt.s32.totalorder %s17, 3
      %s243 = scalar_select %p242, %s17, 3
      %s244 = smul.addr %s243, 2
      %s245 = smul.addr %s244, 8
      %s246 = scalar_lea.vmem %s0, %s245
      %p247 = scmp.lt.s32.totalorder %s17, 3
      %s248 = scalar_select %p247, %s17, 3
      %s249 = smul.addr %s248, 4
      %s250 = smul.addr %s249, 8
      %s251 = scalar_lea.vmem %s6, %s250
      %v253 = vld [vmem:[%s246] sm:$0xff]
      %v254 = vld [vmem:[%s246 + $0x8] sm:$0xff]
      %v255 = vpack.c.bf16 %v254, %v253
      %v256 = vld [vmem:[%s2] sm:$0xf]
      %v257 = vld [vmem:[%s2 + $0x4] sm:$0xf]
      %v258 = vld [vmem:[%s2 + $0x8] sm:$0xf]
      %v259 = vld [vmem:[%s2 + $0xc] sm:$0xf]
      %v264 = vunpack.c.l.b16 %v256
      %v265 = vunpack.c.l.b16 %v257
      %v266 = vunpack.c.l.b16 %v258
      %v267 = vunpack.c.l.b16 %v259
      %v268 = vpack.c.b16 %v265, %v264
      %v269 = vpack.c.b16 %v267, %v266
      %vm272 = vcmask 261120
      %v274 = vsel %vm272, %v255, 0
      %276 = vmatprep.subr.bf16.mxu0 0
      %277 = vmatpush1.bf16.msra.mxu0 0
      %278 = vmatprep.subr.bf16.mxu0 0
      %279 = vmatpush1.bf16.msra.mxu0 0
      %280 = vmatprep.subr.bf16.mxu0 0
      %281 = vmatpush1.bf16.msra.mxu0 0
      %282 = vmatprep.subr.bf16.mxu0 0
      %283 = vmatpush1.bf16.msra.mxu0 0
      %284 = vmatprep.subr.bf16.mxu0 0
      %285 = vmatpush1.bf16.msra.mxu0 0
      %286 = vmatprep.subr.bf16.mxu0 0
      %287 = vmatpush1.bf16.msra.mxu0 0
      %288 = vmatprep.subr.bf16.mxu0 0
      %289 = vmatpush1.bf16.msra.mxu0 %v269
      %290 = vmatprep.subr.bf16.mxu0 0
      %291 = vmatpush1.bf16.msra.mxu0 %v268
      %292 = vmatprep.subr.bf16.mxu0 0
      %293 = vmatpush2.bf16.msra.mxu0 0
      %294 = vmatprep.subr.bf16.mxu0 0
      %295 = vmatpush2.bf16.msra.mxu0 0
      %296 = vmatprep.subr.bf16.mxu0 0
      %297 = vmatpush2.bf16.msra.mxu0 0
      %298 = vmatprep.subr.bf16.mxu0 0
      %299 = vmatpush2.bf16.msra.mxu0 0
      %300 = vmatprep.subr.bf16.mxu0 0
      %301 = vmatpush2.bf16.msra.mxu0 0
      %302 = vmatprep.subr.bf16.mxu0 0
      %303 = vmatpush2.bf16.msra.mxu0 0
      %304 = vmatprep.subr.bf16.mxu0 0
      %305 = vmatpush2.bf16.msra.mxu0 0
      %306 = vmatprep.subr.bf16.mxu0 0
      %307 = vmatpush2.bf16.msra.mxu0 0
      %308 = vmatprep.mubr.bf16.mxu0 0
      %309 = vmatmul.mubr.bf16.gmra.mxu0 %v274
      %v310 = vpop.f32.mrf.mxu0
      %v311 = vadd.f32 0.0, %v310
      %v312 = vpop.f32.mrf.mxu0
      %v313 = vpop.f32.mrf.mxu0
      %v314 = vadd.f32 0.0, %v313
      %v315 = vpop.f32.mrf.mxu0
      %316 = vdwg.mxu0
      %v317 = vld [vmem:[%s1] sm:$0xf]
      %v318 = vld [vmem:[%s1 + $0x4] sm:$0xf]
      %v319 = vld [vmem:[%s1 + $0x8] sm:$0xf]
      %v320 = vld [vmem:[%s1 + $0xc] sm:$0xf]
      %v321 = vpack.c.bf16 %v314, %v311
      %v322 = vld [vmem:[%s3] sm:$0x1]
      %v324 = vlaneseq
      %v325 = vshrl.u32 %v324, 7
      %v326 = vsub.s32 0, %v325
      %v327 = vrot.slane %v322, %v326
      %v333 = vunpack.c.l.b16 %v317
      %v334 = vunpack.c.l.b16 %v318
      %v335 = vunpack.c.l.b16 %v319
      %v336 = vunpack.c.l.b16 %v320
      %v337 = vpack.c.b16 %v334, %v333
      %v338 = vpack.c.b16 %v336, %v335
      %vm339 = vcmask 130048
      %v341 = vsel %vm339, %v337, 0
      %v344 = vsel %vm339, %v338, 0
      %346 = vmatprep.subr.bf16.mxu0 0
      %347 = vmatpush1.bf16.msra.mxu0 0
      %348 = vmatprep.subr.bf16.mxu0 0
      %349 = vmatpush1.bf16.msra.mxu0 0
      %350 = vmatprep.subr.bf16.mxu0 0
      %351 = vmatpush1.bf16.msra.mxu0 0
      %352 = vmatprep.subr.bf16.mxu0 0
      %353 = vmatpush1.bf16.msra.mxu0 0
      %354 = vmatprep.subr.bf16.mxu0 0
      %355 = vmatpush1.bf16.msra.mxu0 0
      %356 = vmatprep.subr.bf16.mxu0 0
      %357 = vmatpush1.bf16.msra.mxu0 0
      %358 = vmatprep.subr.bf16.mxu0 0
      %359 = vmatpush1.bf16.msra.mxu0 0
      %360 = vmatprep.subr.bf16.mxu0 0
      %361 = vmatpush1.bf16.msra.mxu0 %v321
      %362 = vmatprep.subr.bf16.mxu0 0
      %363 = vmatpush2.bf16.msra.mxu0 0
      %364 = vmatprep.subr.bf16.mxu0 0
      %365 = vmatpush2.bf16.msra.mxu0 0
      %366 = vmatprep.subr.bf16.mxu0 0
      %367 = vmatpush2.bf16.msra.mxu0 0
      %368 = vmatprep.subr.bf16.mxu0 0
      %369 = vmatpush2.bf16.msra.mxu0 0
      %370 = vmatprep.subr.bf16.mxu0 0
      %371 = vmatpush2.bf16.msra.mxu0 0
      %372 = vmatprep.subr.bf16.mxu0 0
      %373 = vmatpush2.bf16.msra.mxu0 0
      %374 = vmatprep.subr.bf16.mxu0 0
      %375 = vmatpush2.bf16.msra.mxu0 0
      %376 = vmatprep.subr.bf16.mxu0 0
      %377 = vmatpush2.bf16.msra.mxu0 0
      %378 = vmatprep.mubr.bf16.mxu0 0
      %379 = vmatmul.mubr.bf16.gmra.mxu0 %v341
      %v380 = vpop.f32.mrf.mxu0
      %v381 = vadd.f32 %v327, %v380
      %v382 = vpop.f32.mrf.mxu0
      %v383 = vpop.f32.mrf.mxu0
      %v384 = vadd.f32 %v327, %v383
      %v385 = vpop.f32.mrf.mxu0
      %386 = vmatprep.mubr.bf16.mxu0 0
      %387 = vmatmul.mubr.bf16.gmra.mxu0 %v344
      %v388 = vpop.f32.mrf.mxu0
      %v389 = vadd.f32 %v327, %v388
      %v390 = vpop.f32.mrf.mxu0
      %v391 = vpop.f32.mrf.mxu0
      %v392 = vadd.f32 %v327, %v391
      %v393 = vpop.f32.mrf.mxu0
      %394 = vdwg.mxu0
      %v395 = vmul.f32 %v381, %v381
      %v396 = vmul.f32 %v384, %v384
      %v397 = vmul.f32 %v389, %v389
      %v398 = vmul.f32 %v392, %v392
      %v399 = vmul.f32 %v381, %v395
      %v400 = vmul.f32 %v384, %v396
      %v401 = vmul.f32 %v389, %v397
      %v402 = vmul.f32 %v392, %v398
      %v403 = vmul.f32 %v399, 0.044715
      %v404 = vmul.f32 %v400, 0.044715
      %v405 = vmul.f32 %v401, 0.044715
      %v406 = vmul.f32 %v402, 0.044715
      %v407 = vadd.f32 %v381, %v403
      %v408 = vadd.f32 %v384, %v404
      %v409 = vadd.f32 %v389, %v405
      %v410 = vadd.f32 %v392, %v406
      %v411 = vmul.f32 %v407, 0.7978846
      %v412 = vmul.f32 %v408, 0.7978846
      %v413 = vmul.f32 %v409, 0.7978846
      %v414 = vmul.f32 %v410, 0.7978846
      %v415 = vtanh.pop %v411
      %v416 = vtanh.pop %v412
      %v417 = vtanh.pop %v413
      %v418 = vtanh.pop %v414
      %v419 = vadd.f32 %v415, 1.0
      %v420 = vadd.f32 %v416, 1.0
      %v421 = vadd.f32 %v417, 1.0
      %v422 = vadd.f32 %v418, 1.0
      %v423 = vmul.f32 %v419, 0.5
      %v424 = vmul.f32 %v420, 0.5
      %v425 = vmul.f32 %v421, 0.5
      %v426 = vmul.f32 %v422, 0.5
      %v427 = vmul.f32 %v381, %v423
      %v428 = vmul.f32 %v384, %v424
      %v429 = vmul.f32 %v389, %v425
      %v430 = vmul.f32 %v392, %v426
      %v431 = vpack.c.bf16 %v428, %v427
      %v432 = vpack.c.bf16 %v430, %v429
      %v433 = vld [vmem:[%s4] sm:$0xf]
      %v434 = vld [vmem:[%s4 + $0x4] sm:$0xf]
      %v435 = vld [vmem:[%s4 + $0x8] sm:$0xf]
      %v436 = vld [vmem:[%s4 + $0xc] sm:$0xf]
      %v437 = vld [vmem:[%s4 + $0x10] sm:$0xf]
      %v438 = vld [vmem:[%s4 + $0x14] sm:$0xf]
      %v439 = vld [vmem:[%s4 + $0x18] sm:$0xf]
      %v440 = vld [vmem:[%s4 + $0x1c] sm:$0xf]
      %v441 = vld [vmem:[%s5] sm:$0x1]
      %v443 = vlaneseq
      %v444 = vshrl.u32 %v443, 7
      %v445 = vsub.s32 0, %v444
      %v446 = vrot.slane %v441, %v445
      %v456 = vunpack.c.l.b16 %v433
      %v457 = vunpack.c.l.b16 %v434
      %v458 = vunpack.c.l.b16 %v435
      %v459 = vunpack.c.l.b16 %v436
      %v460 = vunpack.c.l.b16 %v437
      %v461 = vunpack.c.l.b16 %v438
      %v462 = vunpack.c.l.b16 %v439
      %v463 = vunpack.c.l.b16 %v440
      %v464 = vpack.c.b16 %v457, %v456
      %v465 = vpack.c.b16 %v459, %v458
      %v466 = vpack.c.b16 %v461, %v460
      %v467 = vpack.c.b16 %v463, %v462
      %vm472 = vcmask 523264
      %v474 = vsel %vm472, %v431, 0
      %v477 = vsel %vm472, %v432, 0
      %479 = vmatprep.subr.bf16.mxu0 0
      %480 = vmatpush1.bf16.msra.mxu0 0
      %481 = vmatprep.subr.bf16.mxu0 0
      %482 = vmatpush1.bf16.msra.mxu0 0
      %483 = vmatprep.subr.bf16.mxu0 0
      %484 = vmatpush1.bf16.msra.mxu0 0
      %485 = vmatprep.subr.bf16.mxu0 0
      %486 = vmatpush1.bf16.msra.mxu0 0
      %487 = vmatprep.subr.bf16.mxu0 0
      %488 = vmatpush1.bf16.msra.mxu0 %v467
      %489 = vmatprep.subr.bf16.mxu0 0
      %490 = vmatpush1.bf16.msra.mxu0 %v466
      %491 = vmatprep.subr.bf16.mxu0 0
      %492 = vmatpush1.bf16.msra.mxu0 %v465
      %493 = vmatprep.subr.bf16.mxu0 0
      %494 = vmatpush1.bf16.msra.mxu0 %v464
      %495 = vmatprep.subr.bf16.mxu0 0
      %496 = vmatpush2.bf16.msra.mxu0 0
      %497 = vmatprep.subr.bf16.mxu0 0
      %498 = vmatpush2.bf16.msra.mxu0 0
      %499 = vmatprep.subr.bf16.mxu0 0
      %500 = vmatpush2.bf16.msra.mxu0 0
      %501 = vmatprep.subr.bf16.mxu0 0
      %502 = vmatpush2.bf16.msra.mxu0 0
      %503 = vmatprep.subr.bf16.mxu0 0
      %504 = vmatpush2.bf16.msra.mxu0 0
      %505 = vmatprep.subr.bf16.mxu0 0
      %506 = vmatpush2.bf16.msra.mxu0 0
      %507 = vmatprep.subr.bf16.mxu0 0
      %508 = vmatpush2.bf16.msra.mxu0 0
      %509 = vmatprep.subr.bf16.mxu0 0
      %510 = vmatpush2.bf16.msra.mxu0 0
      %511 = vmatprep.mubr.bf16.mxu0 0
      %512 = vmatmul.mubr.bf16.gmra.mxu0 %v474
      %v513 = vpop.f32.mrf.mxu0
      %v514 = vadd.f32 %v446, %v513
      %v515 = vpop.f32.mrf.mxu0
      %v516 = vpop.f32.mrf.mxu0
      %v517 = vadd.f32 %v446, %v516
      %v518 = vpop.f32.mrf.mxu0
      %519 = vmatprep.mubr.bf16.mxu0 0
      %520 = vmatmul.mubr.bf16.gmra.mxu0 %v477
      %v521 = vpop.f32.mrf.mxu0
      %v522 = vadd.f32 %v446, %v521
      %v523 = vpop.f32.mrf.mxu0
      %v524 = vpop.f32.mrf.mxu0
      %v525 = vadd.f32 %v446, %v524
      %v526 = vpop.f32.mrf.mxu0
      %527 = vdwg.mxu0
      %528 = vst [vmem:[%s251] sm:$0xff] %v514
      %529 = vst [vmem:[%s251 + $0x8] sm:$0xff] %v517
      %530 = vst [vmem:[%s251 + $0x10] sm:$0xff] %v522
      %531 = vst [vmem:[%s251 + $0x18] sm:$0xff] %v525
      %p532 = scmp.lt.s32.totalorder %s17, 3
      %s533 = scalar_select %p532, %s17, 3
      %s534 = smul.addr %s533, 4
      %s535 = smul.addr %s534, 8
      %s536 = scalar_lea.vmem %s6, %s535
      // Predicated region
      $region45: #{audio_tokenizer_forward_batched.1} parent=43 // pred_check
        %p537 = pneg %p166
      $region46: #{audio_tokenizer_forward_batched.1} parent=43 // pred_check_branch
        %539 = sbr.rel (%p537) target = $region48
      $region47: #{audio_tokenizer_forward_batched.1} parent=43 // pred_region
        _
      $region48: #{audio_tokenizer_forward_batched.1} parent=43 // pred_fallthru
        _
    $region44: #{audio_tokenizer_forward_batched.1} parent=5 // pred_fallthru
      _
    %p540 = scmp.le.s32.totalorder 2, %s12
    // Predicated region
    $region49: #{audio_tokenizer_forward_batched.1} parent=5 // pred_check
      %p541 = pneg %p540
    $region50: #{audio_tokenizer_forward_batched.1} parent=5 // pred_check_branch
      %543 = sbr.rel (%p541) target = $region52
    $region51: #{audio_tokenizer_forward_batched.1} parent=5 // pred_region
      %s544 = ssub.s32 %s12, 2
      // Predicated region
      $region53: #{audio_tokenizer_forward_batched.1} parent=51 // pred_check
        %p545 = pneg %p172
      $region54: #{audio_tokenizer_forward_batched.1} parent=51 // pred_check_branch
        %547 = sbr.rel (%p545) target = $region56
      $region55: #{audio_tokenizer_forward_batched.1} parent=51 // pred_region
        %p548 = scmp.lt.s32.totalorder %s18, 3
        %s549 = scalar_select %p548, %s18, 3
        %s550 = smul.addr %s549, 4
        %s551 = smul.addr %s550, 8
        %s552 = scalar_lea.vmem %s6, %s551
      $region56: #{audio_tokenizer_forward_batched.1} parent=51 // pred_fallthru
        _
    $region52: #{audio_tokenizer_forward_batched.1} parent=5 // pred_fallthru
      _
  $region6: #{audio_tokenizer_forward_batched.1} parent=0 // loop_footer
    %s16 = sadd.s32 1, %s12
  $region7: #{audio_tokenizer_forward_batched.1} parent=0 // loop_footer_branch
    %11 = sbr.rel target = $region3
  $region8: #{audio_tokenizer_forward_batched.1} parent=0 // loop_exit
    _

</llo_original>
